<compile_context>
chip_gen: v7x
topology: tpu7x:2x2x1
jax: 0.10.0
libtpu: 0.0.40
codegen_flags: <defaults>
</compile_context>

<pallas_src>
import functools

import jax
import jax.numpy as jnp
from jax.experimental import pallas as pl
from jax.experimental.pallas import tpu as pltpu

# ----------------------------- configuration (small, module-consistent) --------------
SCALE = 2
IN_SHAPE = (8, 8)          # (H, W) of the block input
IN_C = (4, 8)              # ConvTranspose2d in-channels  (in_c[1] == out_c[0])
OUT_C = (8, 4)             # ConvTranspose2d out-channels
KERNELS = (3, 3)           # odd kernels (calc_out_shape assumes K//2*2 == K-1)
LN_EPS = 1e-5
ACT = "relu"


def _out_hw(hw, k):
    # BDecBlock.calc_out_shape
    return hw[0] + (k // 2) * 2, hw[1] + (k // 2) * 2


# ----------------------------- fused Pallas kernel ------------------------------------
def _convt_ln_act_kernel(p_ref, w_ref, b_ref, g_ref, beta_ref, o_ref, *, act, eps):
    """One batch sample: out = act(LayerNorm(W @ patches + b)).

    p_ref    : (Cin*K*K, Ho*Wo)  im2col patches (lane-dense along Ho*Wo)
    w_ref    : (Cout, Cin*K*K)   matmul-ready ConvTranspose2d weights
    b_ref    : (Cout, 1)         bias
    g_ref    : (Cout, Ho*Wo)     LayerNorm weight (flattened [C,H,W])
    beta_ref : (Cout, Ho*Wo)     LayerNorm bias
    o_ref    : (Cout, Ho*Wo)
    """
    acc = jnp.dot(w_ref[...], p_ref[...], preferred_element_type=jnp.float32)
    acc = acc + b_ref[...]
    # LayerNorm over the full (C, H, W) block of this sample (PyTorch semantics).
    mu = jnp.mean(acc)
    xc = acc - mu
    var = jnp.mean(xc * xc)
    y = xc * jax.lax.rsqrt(var + eps)
    y = y * g_ref[...] + beta_ref[...]
    if act == "relu":
        y = jnp.maximum(y, 0.0)
    elif act == "gelu":
        y = jax.nn.gelu(y)
    o_ref[...] = y.astype(o_ref.dtype)


def convt_ln_act(x, w_mat, bias, gamma, beta, k, act):
    """x:(B,Cin,H,W) -> (B,Cout,Ho,Wo): stride-1/pad-0 ConvTranspose2d + LN + act.

    The transposed conv is computed as a 'full' convolution: pad by K-1 and run a
    valid conv with the (pre-flipped, pre-transposed) kernel.  The im2col glue emits
    patches directly as (B, Cin*K*K, Ho*Wo) so the in-kernel matmul output is
    lane-dense along Ho*Wo and already channel-first for the next layer.
    """
    B, cin, H, W = x.shape
    ho, wo = H + k - 1, W + k - 1
    P = ho * wo
    CK = cin * k * k
    cout = w_mat.shape[0]

    xp = jnp.pad(x, ((0, 0), (0, 0), (k - 1, k - 1), (k - 1, k - 1)))
    cols = [xp[:, :, kh:kh + ho, kw:kw + wo] for kh in range(k) for kw in range(k)]
    patches = jnp.stack(cols, axis=2).reshape(B, CK, P)   # (B, Cin*K*K, Ho*Wo)

    kernel = functools.partial(_convt_ln_act_kernel, act=act, eps=LN_EPS)
    out = pl.pallas_call(
        kernel,
        out_shape=jax.ShapeDtypeStruct((B, cout, P), jnp.float32),
        grid=(B,),
        in_specs=[
            pl.BlockSpec((None, CK, P), lambda b: (b, 0, 0)),   # patches: per-sample
            pl.BlockSpec((cout, CK), lambda b: (0, 0)),         # weights: resident
            pl.BlockSpec((cout, 1), lambda b: (0, 0)),          # bias
            pl.BlockSpec((cout, P), lambda b: (0, 0)),          # LN gamma
            pl.BlockSpec((cout, P), lambda b: (0, 0)),          # LN beta
        ],
        out_specs=pl.BlockSpec((None, cout, P), lambda b: (b, 0, 0)),
        compiler_params=pltpu.CompilerParams(dimension_semantics=("parallel",)),
    )(patches, w_mat, bias, gamma, beta)
    return out.reshape(B, cout, ho, wo)


# ----------------------------- parameters ---------------------------------------------
def init_raw_params(key):
    h1, w1 = _out_hw((IN_SHAPE[0] * SCALE, IN_SHAPE[1] * SCALE), KERNELS[0])
    h2, w2 = _out_hw((h1, w1), KERNELS[1])

    def normal(i, shape, scale=1.0):
        return scale * jax.random.normal(jax.random.fold_in(key, i), shape, jnp.float32)

    return {
        # ConvTranspose2d weights in the PyTorch layout (in_c, out_c, K, K)
        "w1": normal(0, (IN_C[0], OUT_C[0], KERNELS[0], KERNELS[0]),
                     1.0 / (IN_C[0] * KERNELS[0] ** 2) ** 0.5),
        "b1": normal(1, (OUT_C[0],), 0.05),
        "g1": 1.0 + normal(2, (OUT_C[0], h1, w1), 0.05),
        "be1": normal(3, (OUT_C[0], h1, w1), 0.05),
        "w2": normal(4, (IN_C[1], OUT_C[1], KERNELS[1], KERNELS[1]),
                     1.0 / (IN_C[1] * KERNELS[1] ** 2) ** 0.5),
        "b2": normal(5, (OUT_C[1],), 0.05),
        "g2": 1.0 + normal(6, (OUT_C[1], h2, w2), 0.05),
        "be2": normal(7, (OUT_C[1], h2, w2), 0.05),
    }


def prepare_params(raw):
    """One-time layout prep (hoisted out of the jitted forward, per the perf review):
    bake ConvTranspose2d weights into matmul-ready (Cout, Cin*K*K) matrices (spatial
    flip + in/out transpose) and flatten the LayerNorm affine params."""
    def conv_mat(wt):
        cin, cout, k, _ = wt.shape
        wc = jnp.flip(wt, (2, 3)).transpose(1, 0, 2, 3)          # (Cout, Cin, K, K)
        return wc.reshape(cout, cin * k * k)

    return {
        "w1": conv_mat(raw["w1"]), "b1": raw["b1"].reshape(-1, 1),
        "g1": raw["g1"].reshape(raw["g1"].shape[0], -1),
        "be1": raw["be1"].reshape(raw["be1"].shape[0], -1),
        "w2": conv_mat(raw["w2"]), "b2": raw["b2"].reshape(-1, 1),
        "g2": raw["g2"].reshape(raw["g2"].shape[0], -1),
        "be2": raw["be2"].reshape(raw["be2"].shape[0], -1),
    }


# ----------------------------- BDecBlock.forward ---------------------------------------
def bdec_block_forward(prep, x):
    # nearest-neighbour upsample by SCALE (tiny glue; the heavy work is in-kernel)
    o = jnp.repeat(jnp.repeat(x, SCALE, axis=2), SCALE, axis=3)
    o = convt_ln_act(o, prep["w1"], prep["b1"], prep["g1"], prep["be1"], KERNELS[0], ACT)
    o = convt_ln_act(o, prep["w2"], prep["b2"], prep["g2"], prep["be2"], KERNELS[1], ACT)
    return o


# ----------------------------- pure-JAX reference (for correctness check) --------------
def _act_ref(x):
    return jnp.maximum(x, 0.0) if ACT == "relu" else jax.nn.gelu(x)


def _convt_ref(x, wt, b):
    k = wt.shape[-1]
    wc = jnp.flip(wt, (2, 3)).transpose(1, 0, 2, 3)              # (Cout, Cin, K, K)
    y = jax.lax.conv_general_dilated(
        x, wc, window_strides=(1, 1), padding=[(k - 1, k - 1), (k - 1, k - 1)],
        dimension_numbers=("NCHW", "OIHW", "NCHW"),
        precision=jax.lax.Precision.HIGHEST)
    return y + b.reshape(1, -1, 1, 1)


def _ln_ref(x, g, be):
    mu = jnp.mean(x, axis=(1, 2, 3), keepdims=True)
    var = jnp.mean((x - mu) ** 2, axis=(1, 2, 3), keepdims=True)
    return (x - mu) * jax.lax.rsqrt(var + LN_EPS) * g[None] + be[None]


def bdec_block_ref(raw, x):
    o = jnp.repeat(jnp.repeat(x, SCALE, axis=2), SCALE, axis=3)
    o = _act_ref(_ln_ref(_convt_ref(o, raw["w1"], raw["b1"]), raw["g1"], raw["be1"]))
    o = _act_ref(_ln_ref(_convt_ref(o, raw["w2"], raw["b2"]), raw["g2"], raw["be2"]))
    return o


# ----------------------------- main -----------------------------------------------------
if __name__ == "__main__":
    key = jax.random.PRNGKey(0)
    B = 2
    x = jax.random.normal(jax.random.fold_in(key, 100),
                          (B, IN_C[0], IN_SHAPE[0], IN_SHAPE[1]), jnp.float32)

    raw = init_raw_params(key)
    prep = prepare_params(raw)          # layout prep runs once, outside the jit

    fwd = jax.jit(bdec_block_forward)
    y = jax.block_until_ready(fwd(prep, x))

    h1, w1 = _out_hw((IN_SHAPE[0] * SCALE, IN_SHAPE[1] * SCALE), KERNELS[0])
    h2, w2 = _out_hw((h1, w1), KERNELS[1])
    assert y.shape == (B, OUT_C[1], h2, w2), y.shape
    assert bool(jnp.all(jnp.isfinite(y)))

    y_ref = bdec_block_ref(raw, x)
    max_err = float(jnp.max(jnp.abs(y - y_ref)))
    assert jnp.allclose(y, y_ref, atol=2e-3, rtol=2e-3), f"mismatch, max_err={max_err}"

    print("KERNEL_OK")
</pallas_src>

<mosaic_0001>
module attributes {stable_mosaic.version = 11 : i64} {
  func.func @_convt_ln_act_kernel(%arg0: i32, %arg1: memref<1x36x324xf32, #tpu.memory_space<vmem>>, %arg2: memref<8x36xf32, #tpu.memory_space<vmem>>, %arg3: memref<8x1xf32, #tpu.memory_space<vmem>>, %arg4: memref<8x324xf32, #tpu.memory_space<vmem>>, %arg5: memref<8x324xf32, #tpu.memory_space<vmem>>, %arg6: memref<1x8x324xf32, #tpu.memory_space<vmem>>) attributes {dimension_semantics = [#tpu.dimension_semantics<parallel>], iteration_bounds = array<i64: 2>, scalar_prefetch = 0 : i64, scratch_operands = 0 : i64, tpu.core_type = #tpu.core_type<tc>, window_params = [{transform_indices = @transform_0, window_bounds = array<i64: 1, 36, 324>}, {pipeline_mode = #tpu.pipeline_mode<synchronous>, transform_indices = @transform_1, window_bounds = array<i64: 8, 36>}, {pipeline_mode = #tpu.pipeline_mode<synchronous>, transform_indices = @transform_2, window_bounds = array<i64: 8, 1>}, {pipeline_mode = #tpu.pipeline_mode<synchronous>, transform_indices = @transform_3, window_bounds = array<i64: 8, 324>}, {pipeline_mode = #tpu.pipeline_mode<synchronous>, transform_indices = @transform_4, window_bounds = array<i64: 8, 324>}, {transform_indices = @transform_5, window_bounds = array<i64: 1, 8, 324>}]} {
    %c0 = arith.constant 0 : index
    %c0_0 = arith.constant 0 : index
    %0 = vector.load %arg2[%c0, %c0_0] : memref<8x36xf32, #tpu.memory_space<vmem>>, vector<8x36xf32>
    %c0_1 = arith.constant 0 : index
    %c0_2 = arith.constant 0 : index
    %c0_3 = arith.constant 0 : index
    %1 = vector.load %arg1[%c0_1, %c0_2, %c0_3] : memref<1x36x324xf32, #tpu.memory_space<vmem>>, vector<1x36x324xf32>
    %2 = vector.shape_cast %1 : vector<1x36x324xf32> to vector<36x324xf32>
    %cst = arith.constant dense<0.000000e+00> : vector<8x324xf32>
    %3 = tpu.matmul %0, %2, %cst {dimension_numbers = #tpu.dot_dimension_numbers<[1], [0], [0], [1], [0, 0, 1, 1], [], []>} : vector<8x36xf32>, vector<36x324xf32>, vector<8x324xf32> -> vector<8x324xf32>
    %c0_4 = arith.constant 0 : index
    %c0_5 = arith.constant 0 : index
    %4 = vector.load %arg3[%c0_4, %c0_5] : memref<8x1xf32, #tpu.memory_space<vmem>>, vector<8x1xf32>
    %5 = vector.broadcast %4 : vector<8x1xf32> to vector<8x324xf32>
    %6 = arith.addf %3, %5 : vector<8x324xf32>
    %7 = vector.shape_cast %6 : vector<8x324xf32> to vector<1x8x324xf32>
    %cst_6 = arith.constant dense<0.000000e+00> : vector<1xf32>
    %8 = vector.multi_reduction <add>, %7, %cst_6 [1, 2] : vector<1x8x324xf32> to vector<1xf32>
    %9 = vector.shape_cast %8 : vector<1xf32> to vector<1x1x1xf32>
    %10 = vector.extract %9[0, 0, 0] : f32 from vector<1x1x1xf32>
    %cst_7 = arith.constant 2.592000e+03 : f32
    %11 = arith.divf %10, %cst_7 : f32
    %12 = vector.broadcast %11 : f32 to vector<8x324xf32>
    %13 = arith.subf %6, %12 : vector<8x324xf32>
    %14 = arith.mulf %13, %13 : vector<8x324xf32>
    %15 = vector.shape_cast %14 : vector<8x324xf32> to vector<1x8x324xf32>
    %cst_8 = arith.constant dense<0.000000e+00> : vector<1xf32>
    %16 = vector.multi_reduction <add>, %15, %cst_8 [1, 2] : vector<1x8x324xf32> to vector<1xf32>
    %17 = vector.shape_cast %16 : vector<1xf32> to vector<1x1x1xf32>
    %18 = vector.extract %17[0, 0, 0] : f32 from vector<1x1x1xf32>
    %cst_9 = arith.constant 2.592000e+03 : f32
    %19 = arith.divf %18, %cst_9 : f32
    %cst_10 = arith.constant 9.99999974E-6 : f32
    %20 = arith.addf %19, %cst_10 : f32
    %21 = math.rsqrt %20 : f32
    %22 = vector.broadcast %21 : f32 to vector<8x324xf32>
    %23 = arith.mulf %13, %22 : vector<8x324xf32>
    %c0_11 = arith.constant 0 : index
    %c0_12 = arith.constant 0 : index
    %24 = vector.load %arg4[%c0_11, %c0_12] : memref<8x324xf32, #tpu.memory_space<vmem>>, vector<8x324xf32>
    %25 = arith.mulf %23, %24 : vector<8x324xf32>
    %c0_13 = arith.constant 0 : index
    %c0_14 = arith.constant 0 : index
    %26 = vector.load %arg5[%c0_13, %c0_14] : memref<8x324xf32, #tpu.memory_space<vmem>>, vector<8x324xf32>
    %27 = arith.addf %25, %26 : vector<8x324xf32>
    %cst_15 = arith.constant 0.000000e+00 : f32
    %28 = vector.broadcast %cst_15 : f32 to vector<8x324xf32>
    %29 = arith.maximumf %27, %28 : vector<8x324xf32>
    %c0_16 = arith.constant 0 : index
    %c0_17 = arith.constant 0 : index
    %c0_18 = arith.constant 0 : index
    %30 = vector.load %arg6[%c0_16, %c0_17, %c0_18] : memref<1x8x324xf32, #tpu.memory_space<vmem>>, vector<1x8x324xf32>
    %31 = vector.shape_cast %30 : vector<1x8x324xf32> to vector<8x324xf32>
    %32 = vector.shape_cast %29 : vector<8x324xf32> to vector<1x8x324xf32>
    tpu.vector_store %arg6[%c0_16, %c0_17, %c0_18], %32 {strides = array<i32>} : memref<1x8x324xf32, #tpu.memory_space<vmem>>, vector<1x8x324xf32>,
    return
  }
  func.func @transform_0(%arg0: i32) -> (i32, i32, i32) {
    %c0_i32 = arith.constant 0 : i32
    %c0_i32_0 = arith.constant 0 : i32
    %c0_i32_1 = arith.constant 0 : i32
    return %arg0, %c0_i32, %c0_i32_0 : i32, i32, i32
  }
  func.func @transform_1(%arg0: i32) -> (i32, i32) {
    %c0_i32 = arith.constant 0 : i32
    %c0_i32_0 = arith.constant 0 : i32
    %c0_i32_1 = arith.constant 0 : i32
    return %c0_i32, %c0_i32_0 : i32, i32
  }
  func.func @transform_2(%arg0: i32) -> (i32, i32) {
    %c0_i32 = arith.constant 0 : i32
    %c0_i32_0 = arith.constant 0 : i32
    %c0_i32_1 = arith.constant 0 : i32
    return %c0_i32, %c0_i32_0 : i32, i32
  }
  func.func @transform_3(%arg0: i32) -> (i32, i32) {
    %c0_i32 = arith.constant 0 : i32
    %c0_i32_0 = arith.constant 0 : i32
    %c0_i32_1 = arith.constant 0 : i32
    return %c0_i32, %c0_i32_0 : i32, i32
  }
  func.func @transform_4(%arg0: i32) -> (i32, i32) {
    %c0_i32 = arith.constant 0 : i32
    %c0_i32_0 = arith.constant 0 : i32
    %c0_i32_1 = arith.constant 0 : i32
    return %c0_i32, %c0_i32_0 : i32, i32
  }
  func.func @transform_5(%arg0: i32) -> (i32, i32, i32) {
    %c0_i32 = arith.constant 0 : i32
    %c0_i32_0 = arith.constant 0 : i32
    %c0_i32_1 = arith.constant 0 : i32
    return %arg0, %c0_i32, %c0_i32_0 : i32, i32, i32
  }
}

module attributes {stable_mosaic.version = 11 : i64} {
  func.func @_convt_ln_act_kernel(%arg0: i32, %arg1: memref<1x72x400xf32, #tpu.memory_space<vmem>>, %arg2: memref<4x72xf32, #tpu.memory_space<vmem>>, %arg3: memref<4x1xf32, #tpu.memory_space<vmem>>, %arg4: memref<4x400xf32, #tpu.memory_space<vmem>>, %arg5: memref<4x400xf32, #tpu.memory_space<vmem>>, %arg6: memref<1x4x400xf32, #tpu.memory_space<vmem>>) attributes {dimension_semantics = [#tpu.dimension_semantics<parallel>], iteration_bounds = array<i64: 2>, scalar_prefetch = 0 : i64, scratch_operands = 0 : i64, tpu.core_type = #tpu.core_type<tc>, window_params = [{transform_indices = @transform_0, window_bounds = array<i64: 1, 72, 400>}, {pipeline_mode = #tpu.pipeline_mode<synchronous>, transform_indices = @transform_1, window_bounds = array<i64: 4, 72>}, {pipeline_mode = #tpu.pipeline_mode<synchronous>, transform_indices = @transform_2, window_bounds = array<i64: 4, 1>}, {pipeline_mode = #tpu.pipeline_mode<synchronous>, transform_indices = @transform_3, window_bounds = array<i64: 4, 400>}, {pipeline_mode = #tpu.pipeline_mode<synchronous>, transform_indices = @transform_4, window_bounds = array<i64: 4, 400>}, {transform_indices = @transform_5, window_bounds = array<i64: 1, 4, 400>}]} {
    %c0 = arith.constant 0 : index
    %c0_0 = arith.constant 0 : index
    %0 = vector.load %arg2[%c0, %c0_0] : memref<4x72xf32, #tpu.memory_space<vmem>>, vector<4x72xf32>
    %c0_1 = arith.constant 0 : index
    %c0_2 = arith.constant 0 : index
    %c0_3 = arith.constant 0 : index
    %1 = vector.load %arg1[%c0_1, %c0_2, %c0_3] : memref<1x72x400xf32, #tpu.memory_space<vmem>>, vector<1x72x400xf32>
    %2 = vector.shape_cast %1 : vector<1x72x400xf32> to vector<72x400xf32>
    %cst = arith.constant dense<0.000000e+00> : vector<4x400xf32>
    %3 = tpu.matmul %0, %2, %cst {dimension_numbers = #tpu.dot_dimension_numbers<[1], [0], [0], [1], [0, 0, 1, 1], [], []>} : vector<4x72xf32>, vector<72x400xf32>, vector<4x400xf32> -> vector<4x400xf32>
    %c0_4 = arith.constant 0 : index
    %c0_5 = arith.constant 0 : index
    %4 = vector.load %arg3[%c0_4, %c0_5] : memref<4x1xf32, #tpu.memory_space<vmem>>, vector<4x1xf32>
    %5 = vector.broadcast %4 : vector<4x1xf32> to vector<4x400xf32>
    %6 = arith.addf %3, %5 : vector<4x400xf32>
    %7 = vector.shape_cast %6 : vector<4x400xf32> to vector<1x4x400xf32>
    %cst_6 = arith.constant dense<0.000000e+00> : vector<1xf32>
    %8 = vector.multi_reduction <add>, %7, %cst_6 [1, 2] : vector<1x4x400xf32> to vector<1xf32>
    %9 = vector.shape_cast %8 : vector<1xf32> to vector<1x1x1xf32>
    %10 = vector.extract %9[0, 0, 0] : f32 from vector<1x1x1xf32>
    %cst_7 = arith.constant 1.600000e+03 : f32
    %11 = arith.divf %10, %cst_7 : f32
    %12 = vector.broadcast %11 : f32 to vector<4x400xf32>
    %13 = arith.subf %6, %12 : vector<4x400xf32>
    %14 = arith.mulf %13, %13 : vector<4x400xf32>
    %15 = vector.shape_cast %14 : vector<4x400xf32> to vector<1x4x400xf32>
    %cst_8 = arith.constant dense<0.000000e+00> : vector<1xf32>
    %16 = vector.multi_reduction <add>, %15, %cst_8 [1, 2] : vector<1x4x400xf32> to vector<1xf32>
    %17 = vector.shape_cast %16 : vector<1xf32> to vector<1x1x1xf32>
    %18 = vector.extract %17[0, 0, 0] : f32 from vector<1x1x1xf32>
    %cst_9 = arith.constant 1.600000e+03 : f32
    %19 = arith.divf %18, %cst_9 : f32
    %cst_10 = arith.constant 9.99999974E-6 : f32
    %20 = arith.addf %19, %cst_10 : f32
    %21 = math.rsqrt %20 : f32
    %22 = vector.broadcast %21 : f32 to vector<4x400xf32>
    %23 = arith.mulf %13, %22 : vector<4x400xf32>
    %c0_11 = arith.constant 0 : index
    %c0_12 = arith.constant 0 : index
    %24 = vector.load %arg4[%c0_11, %c0_12] : memref<4x400xf32, #tpu.memory_space<vmem>>, vector<4x400xf32>
    %25 = arith.mulf %23, %24 : vector<4x400xf32>
    %c0_13 = arith.constant 0 : index
    %c0_14 = arith.constant 0 : index
    %26 = vector.load %arg5[%c0_13, %c0_14] : memref<4x400xf32, #tpu.memory_space<vmem>>, vector<4x400xf32>
    %27 = arith.addf %25, %26 : vector<4x400xf32>
    %cst_15 = arith.constant 0.000000e+00 : f32
    %28 = vector.broadcast %cst_15 : f32 to vector<4x400xf32>
    %29 = arith.maximumf %27, %28 : vector<4x400xf32>
    %c0_16 = arith.constant 0 : index
    %c0_17 = arith.constant 0 : index
    %c0_18 = arith.constant 0 : index
    %30 = vector.load %arg6[%c0_16, %c0_17, %c0_18] : memref<1x4x400xf32, #tpu.memory_space<vmem>>, vector<1x4x400xf32>
    %31 = vector.shape_cast %30 : vector<1x4x400xf32> to vector<4x400xf32>
    %32 = vector.shape_cast %29 : vector<4x400xf32> to vector<1x4x400xf32>
    tpu.vector_store %arg6[%c0_16, %c0_17, %c0_18], %32 {strides = array<i32>} : memref<1x4x400xf32, #tpu.memory_space<vmem>>, vector<1x4x400xf32>,
    return
  }
  func.func @transform_0(%arg0: i32) -> (i32, i32, i32) {
    %c0_i32 = arith.constant 0 : i32
    %c0_i32_0 = arith.constant 0 : i32
    %c0_i32_1 = arith.constant 0 : i32
    return %arg0, %c0_i32, %c0_i32_0 : i32, i32, i32
  }
  func.func @transform_1(%arg0: i32) -> (i32, i32) {
    %c0_i32 = arith.constant 0 : i32
    %c0_i32_0 = arith.constant 0 : i32
    %c0_i32_1 = arith.constant 0 : i32
    return %c0_i32, %c0_i32_0 : i32, i32
  }
  func.func @transform_2(%arg0: i32) -> (i32, i32) {
    %c0_i32 = arith.constant 0 : i32
    %c0_i32_0 = arith.constant 0 : i32
    %c0_i32_1 = arith.constant 0 : i32
    return %c0_i32, %c0_i32_0 : i32, i32
  }
  func.func @transform_3(%arg0: i32) -> (i32, i32) {
    %c0_i32 = arith.constant 0 : i32
    %c0_i32_0 = arith.constant 0 : i32
    %c0_i32_1 = arith.constant 0 : i32
    return %c0_i32, %c0_i32_0 : i32, i32
  }
  func.func @transform_4(%arg0: i32) -> (i32, i32) {
    %c0_i32 = arith.constant 0 : i32
    %c0_i32_0 = arith.constant 0 : i32
    %c0_i32_1 = arith.constant 0 : i32
    return %c0_i32, %c0_i32_0 : i32, i32
  }
  func.func @transform_5(%arg0: i32) -> (i32, i32, i32) {
    %c0_i32 = arith.constant 0 : i32
    %c0_i32_0 = arith.constant 0 : i32
    %c0_i32_1 = arith.constant 0 : i32
    return %arg0, %c0_i32, %c0_i32_0 : i32, i32, i32
  }
}

</mosaic_0001>

<llo_original>
// kernel: bdec_block_forward.2
$region0: #{bdec_block_forward.2}
  #allocation0 [shape = 'u32[]', space=smem, size = 0x4, offset = 0x4, fixed_abs, tag = 'smem constant byte address 0x4 - core index']
  #allocation1 [shape = 'u32[144,128]{1,0:T(1,128)}', space=vmem, size = 0x12000, scoped, tag = 'internal scratch']
  %s0 = inlined_call_operand.vmem [shape: f32[2,36,324], index: 0, kind: input, shape index: {}]
  %s1 = inlined_call_operand.vmem [shape: f32[8,36], index: 1, kind: input, shape index: {}]
  %s2 = inlined_call_operand.vmem [shape: f32[8,1], index: 2, kind: input, shape index: {}]
  %s3 = inlined_call_operand.vmem [shape: f32[8,324], index: 3, kind: input, shape index: {}]
  %s4 = inlined_call_operand.vmem [shape: f32[8,324], index: 4, kind: input, shape index: {}]
  %s5 = inlined_call_operand.vmem [shape: f32[2,8,324], index: 5, kind: output, shape index: {}]
  %s6 = sld [smem:[#allocation0]]
  $region53: #{bdec_block_forward.2} parent=0
    _
  %s8 = ssub.s32 1, %s6
  %s9 = scalar_select 0, %s8, %s6
  loop: start=0, step=1, limit=4
  $region2: #{bdec_block_forward.2} parent=0 // loop_pre_header
    _
  $region3: #{bdec_block_forward.2} parent=0 // loop_header
    %s11 = sphi 0, %s15
    %p12 = scmp.ge.s32.totalorder %s11, 4
    %s21 = sphi 0, %s23
    %s24 = sphi 0, %s21
    %s25 = sphi 0, %s24
    %s41 = sphi 0, %s25
    %s45 = sphi 0, %s45
    %s47 = sphi 0, %s45
    %s48 = sphi 0, %s47
    %s62 = sphi 0, %s48
    %s66 = sphi 0, %s66
    %s68 = sphi 0, %s66
    %s69 = sphi 0, %s68
    %s83 = sphi 0, %s69
    %s87 = sphi 0, %s87
    %s89 = sphi 0, %s87
    %s90 = sphi 0, %s89
    %s104 = sphi 0, %s90
    %s108 = sphi 0, %s108
    %s110 = sphi 0, %s108
    %s111 = sphi 0, %s110
    %s125 = sphi 0, %s111
    %s131 = sphi 0, %s133
    %s134 = sphi 0, %s131
    %s135 = sphi 0, %s134
    %s151 = sphi 0, %s135
  $region4: #{bdec_block_forward.2} parent=0 // loop_header_branch
    %14 = sbr.rel (%p12) target = $region8
  $region5: #{bdec_block_forward.2} parent=0 // loop_body
    %s16 = ssub.s32 %s11, 1
    %s17 = ssub.s32 %s11, 2
    %s18 = sadd.s32 %s11, 1
    %s19 = ssub.s32 %s11, %s18
    %p20 = scmp.eq.s32.totalorder %s19, 0
    %s22 = sadd.s32 %s21, 1
    %s23 = scalar_select %p20, %s21, %s22
    %p26 = pneg %p20
    %p27 = scmp.eq.s32.totalorder %s11, 1
    %p28 = por %p26, %p27
    %p29 = scmp.ne.s32.totalorder %s21, %s24
    %p30 = scmp.eq.s32.totalorder %s11, 0
    %p31 = por %p29, %p30
    %p32 = scmp.ne.s32.totalorder %s21, %s24
    %p33 = scmp.eq.s32.totalorder %s16, 1
    %p34 = por %p32, %p33
    %p35 = scmp.ne.s32.totalorder %s24, %s25
    %p36 = scmp.eq.s32.totalorder %s16, 0
    %p37 = por %p35, %p36
    %p38 = scmp.ne.s32.totalorder %s24, %s25
    %p39 = scmp.eq.s32.totalorder %s17, 1
    %p40 = por %p38, %p39
    %p42 = scmp.ne.s32.totalorder %s25, %s41
    %p43 = scmp.eq.s32.totalorder %s17, 0
    %p44 = por %p42, %p43
    %s46 = sadd.s32 %s45, 1
    %p49 = scmp.eq.s32.totalorder %s11, 1
    %p50 = scmp.ne.s32.totalorder %s45, %s47
    %p51 = scmp.eq.s32.totalorder %s11, 0
    %p52 = por %p50, %p51
    %p53 = scmp.ne.s32.totalorder %s45, %s47
    %p54 = scmp.eq.s32.totalorder %s16, 1
    %p55 = por %p53, %p54
    %p56 = scmp.ne.s32.totalorder %s47, %s48
    %p57 = scmp.eq.s32.totalorder %s16, 0
    %p58 = por %p56, %p57
    %p59 = scmp.ne.s32.totalorder %s47, %s48
    %p60 = scmp.eq.s32.totalorder %s17, 1
    %p61 = por %p59, %p60
    %p63 = scmp.ne.s32.totalorder %s48, %s62
    %p64 = scmp.eq.s32.totalorder %s17, 0
    %p65 = por %p63, %p64
    %s67 = sadd.s32 %s66, 1
    %p70 = scmp.eq.s32.totalorder %s11, 1
    %p71 = scmp.ne.s32.totalorder %s66, %s68
    %p72 = scmp.eq.s32.totalorder %s11, 0
    %p73 = por %p71, %p72
    %p74 = scmp.ne.s32.totalorder %s66, %s68
    %p75 = scmp.eq.s32.totalorder %s16, 1
    %p76 = por %p74, %p75
    %p77 = scmp.ne.s32.totalorder %s68, %s69
    %p78 = scmp.eq.s32.totalorder %s16, 0
    %p79 = por %p77, %p78
    %p80 = scmp.ne.s32.totalorder %s68, %s69
    %p81 = scmp.eq.s32.totalorder %s17, 1
    %p82 = por %p80, %p81
    %p84 = scmp.ne.s32.totalorder %s69, %s83
    %p85 = scmp.eq.s32.totalorder %s17, 0
    %p86 = por %p84, %p85
    %s88 = sadd.s32 %s87, 1
    %p91 = scmp.eq.s32.totalorder %s11, 1
    %p92 = scmp.ne.s32.totalorder %s87, %s89
    %p93 = scmp.eq.s32.totalorder %s11, 0
    %p94 = por %p92, %p93
    %p95 = scmp.ne.s32.totalorder %s87, %s89
    %p96 = scmp.eq.s32.totalorder %s16, 1
    %p97 = por %p95, %p96
    %p98 = scmp.ne.s32.totalorder %s89, %s90
    %p99 = scmp.eq.s32.totalorder %s16, 0
    %p100 = por %p98, %p99
    %p101 = scmp.ne.s32.totalorder %s89, %s90
    %p102 = scmp.eq.s32.totalorder %s17, 1
    %p103 = por %p101, %p102
    %p105 = scmp.ne.s32.totalorder %s90, %s104
    %p106 = scmp.eq.s32.totalorder %s17, 0
    %p107 = por %p105, %p106
    %s109 = sadd.s32 %s108, 1
    %p112 = scmp.eq.s32.totalorder %s11, 1
    %p113 = scmp.ne.s32.totalorder %s108, %s110
    %p114 = scmp.eq.s32.totalorder %s11, 0
    %p115 = por %p113, %p114
    %p116 = scmp.ne.s32.totalorder %s108, %s110
    %p117 = scmp.eq.s32.totalorder %s16, 1
    %p118 = por %p116, %p117
    %p119 = scmp.ne.s32.totalorder %s110, %s111
    %p120 = scmp.eq.s32.totalorder %s16, 0
    %p121 = por %p119, %p120
    %p122 = scmp.ne.s32.totalorder %s110, %s111
    %p123 = scmp.eq.s32.totalorder %s17, 1
    %p124 = por %p122, %p123
    %p126 = scmp.ne.s32.totalorder %s111, %s125
    %p127 = scmp.eq.s32.totalorder %s17, 0
    %p128 = por %p126, %p127
    %s129 = ssub.s32 %s11, %s18
    %p130 = scmp.eq.s32.totalorder %s129, 0
    %s132 = sadd.s32 %s131, 1
    %s133 = scalar_select %p130, %s131, %s132
    %p136 = pneg %p130
    %p137 = scmp.eq.s32.totalorder %s11, 1
    %p138 = por %p136, %p137
    %p139 = scmp.ne.s32.totalorder %s131, %s134
    %p140 = scmp.eq.s32.totalorder %s11, 0
    %p141 = por %p139, %p140
    %p142 = scmp.ne.s32.totalorder %s131, %s134
    %p143 = scmp.eq.s32.totalorder %s16, 1
    %p144 = por %p142, %p143
    %p145 = scmp.ne.s32.totalorder %s134, %s135
    %p146 = scmp.eq.s32.totalorder %s16, 0
    %p147 = por %p145, %p146
    %p148 = scmp.ne.s32.totalorder %s134, %s135
    %p149 = scmp.eq.s32.totalorder %s17, 1
    %p150 = por %p148, %p149
    %p152 = scmp.ne.s32.totalorder %s135, %s151
    %p153 = scmp.eq.s32.totalorder %s17, 0
    %p154 = por %p152, %p153
    %p155 = scmp.le.s32.totalorder 1, %s11
    %p156 = scmp.lt.s32.totalorder %s11, 3
    %p157 = pnand %p155, %p156
    %p158 = pneg %p157
    // Predicated region
    $region9: #{bdec_block_forward.2} parent=5 // pred_check
      _
    $region10: #{bdec_block_forward.2} parent=5 // pred_check_branch
      %160 = sbr.rel (%p157) target = $region12
    $region11: #{bdec_block_forward.2} parent=5 // pred_region
      %s161 = ssub.s32 %s11, 1
      // Predicated region
      $region13: #{bdec_block_forward.2} parent=11 // pred_check
        %p162 = pneg %p58
      $region14: #{bdec_block_forward.2} parent=11 // pred_check_branch
        %164 = sbr.rel (%p162) target = $region16
      $region15: #{bdec_block_forward.2} parent=11 // pred_region
        _
      $region16: #{bdec_block_forward.2} parent=11 // pred_fallthru
        _
      // Predicated region
      $region17: #{bdec_block_forward.2} parent=11 // pred_check
        %p165 = pneg %p79
      $region18: #{bdec_block_forward.2} parent=11 // pred_check_branch
        %167 = sbr.rel (%p165) target = $region20
      $region19: #{bdec_block_forward.2} parent=11 // pred_region
        _
      $region20: #{bdec_block_forward.2} parent=11 // pred_fallthru
        _
      // Predicated region
      $region21: #{bdec_block_forward.2} parent=11 // pred_check
        %p168 = pneg %p100
      $region22: #{bdec_block_forward.2} parent=11 // pred_check_branch
        %170 = sbr.rel (%p168) target = $region24
      $region23: #{bdec_block_forward.2} parent=11 // pred_region
        _
      $region24: #{bdec_block_forward.2} parent=11 // pred_fallthru
        _
      // Predicated region
      $region25: #{bdec_block_forward.2} parent=11 // pred_check
        %p171 = pneg %p121
      $region26: #{bdec_block_forward.2} parent=11 // pred_check_branch
        %173 = sbr.rel (%p171) target = $region28
      $region27: #{bdec_block_forward.2} parent=11 // pred_region
        _
      $region28: #{bdec_block_forward.2} parent=11 // pred_fallthru
        _
    $region12: #{bdec_block_forward.2} parent=5 // pred_fallthru
      _
    %p174 = scmp.lt.s32.totalorder %s11, 2
    // Predicated region
    $region29: #{bdec_block_forward.2} parent=5 // pred_check
      %p175 = pneg %p174
    $region30: #{bdec_block_forward.2} parent=5 // pred_check_branch
      %177 = sbr.rel (%p175) target = $region32
    $region31: #{bdec_block_forward.2} parent=5 // pred_region
      // Predicated region
      $region33: #{bdec_block_forward.2} parent=31 // pred_check
        %p178 = pneg %p31
      $region34: #{bdec_block_forward.2} parent=31 // pred_check_branch
        %180 = sbr.rel (%p178) target = $region36
      $region35: #{bdec_block_forward.2} parent=31 // pred_region
        %p181 = scmp.lt.s32.totalorder %s11, 1
        %s182 = scalar_select %p181, %s11, 1
        %s183 = smul.addr %s182, 15
        %s184 = smul.addr %s183, 8
        %s185 = scalar_lea.vmem %s0, %s184
      $region36: #{bdec_block_forward.2} parent=31 // pred_fallthru
        _
    $region32: #{bdec_block_forward.2} parent=5 // pred_fallthru
      _
    %p186 = scmp.le.s32.totalorder 1, %s11
    %p187 = scmp.lt.s32.totalorder %s11, 3
    %p188 = pnand %p186, %p187
    %p189 = pneg %p188
    // Predicated region
    $region37: #{bdec_block_forward.2} parent=5 // pred_check
      _
    $region38: #{bdec_block_forward.2} parent=5 // pred_check_branch
      %191 = sbr.rel (%p188) target = $region40
    $region39: #{bdec_block_forward.2} parent=5 // pred_region
      %s192 = ssub.s32 %s11, 1
      %p193 = scmp.lt.s32.totalorder %s16, 1
      %s194 = scalar_select %p193, %s16, 1
      %s195 = smul.addr %s194, 15
      %s196 = smul.addr %s195, 8
      %s197 = scalar_lea.vmem %s0, %s196
      %p198 = pneg %p37
      %p199 = pneg %p34
      %p200 = pneg %p58
      %p201 = pneg %p55
      %p202 = pneg %p79
      %p203 = pneg %p76
      %p204 = pneg %p100
      %p205 = pneg %p97
      %p206 = pneg %p121
      %p207 = pneg %p118
      %p208 = pneg %p147
      %p209 = pneg %p144
      %p210 = scmp.lt.s32.totalorder %s16, 1
      %s211 = scalar_select %p210, %s16, 1
      %s212 = smul.addr %s211, 3
      %s213 = smul.addr %s212, 8
      %s214 = scalar_lea.vmem %s5, %s213
      %p215 = scmp.lt.s32.totalorder %s16, 1
      %s216 = scalar_select %p215, %s16, 1
      %s217 = smul.addr %s216, 15
      %s218 = smul.addr %s217, 8
      %s219 = scalar_lea.vmem %s0, %s218
      %p220 = scmp.lt.s32.totalorder %s16, 1
      %s221 = scalar_select %p220, %s16, 1
      %s222 = smul.addr %s221, 3
      %s223 = smul.addr %s222, 8
      %s224 = scalar_lea.vmem %s5, %s223
      %v225 = vld [vmem:[%s1] sm:$0xff]
      %v226 = vld [vmem:[%s219] sm:$0xff]
      %v227 = vld [vmem:[%s219 + $0x8] sm:$0xff]
      %v228 = vld [vmem:[%s219 + $0x10] sm:$0xff]
      %v229 = vld [vmem:[%s219 + $0x18] sm:$0xff]
      %v230 = vld [vmem:[%s219 + $0x20] sm:$0xff]
      %v231 = vld [vmem:[%s219 + $0x28] sm:$0xff]
      %v232 = vld [vmem:[%s219 + $0x30] sm:$0xff]
      %v233 = vld [vmem:[%s219 + $0x38] sm:$0xff]
      %v234 = vld [vmem:[%s219 + $0x40] sm:$0xff]
      %v235 = vld [vmem:[%s219 + $0x48] sm:$0xff]
      %v236 = vld [vmem:[%s219 + $0x50] sm:$0xff]
      %v237 = vld [vmem:[%s219 + $0x58] sm:$0xff]
      %v238 = vld [vmem:[%s219 + $0x60] sm:$0xf]
      %v239 = vld [vmem:[%s219 + $0x68] sm:$0xf]
      %v240 = vld [vmem:[%s219 + $0x70] sm:$0xf]
      %v241 = vld [vmem:[%s2] sm:$0xff]
      %243 = vset.pattern.permute.xlu0 0
      %244 = vperm.xlu0 %243, %v241
      %v245 = vpop.permute.xlu0 %244
      %vm247 = vcmask 293888
      %v249 = vsel %vm247, %v225, 0
      %vm251 = vcmask 1043456
      %v253 = vsel %vm251, %v238, 0
      %v256 = vsel %vm251, %v239, 0
      %v259 = vsel %vm251, %v240, 0
      %261 = vmatprep.subr.mxu0 %v227
      %262 = vmatpush1.msra.mxu0 %v226
      %263 = vmatprep.subr.mxu0 %v230
      %264 = vmatpush1.msra.mxu0 %v229
      %265 = vmatprep.subr.mxu0 %v233
      %266 = vmatpush1.msra.mxu0 %v232
      %267 = vmatprep.subr.mxu0 %v236
      %268 = vmatpush1.msra.mxu0 %v235
      %269 = vmatprep.subr.mxu0 %v256
      %270 = vmatpush1.msra.mxu0 %v253
      %271 = vmatprep.subr.mxu0 0.0
      %272 = vmatpush1.msra.mxu0 0.0
      %273 = vmatprep.subr.mxu0 0.0
      %274 = vmatpush1.msra.mxu0 0.0
      %275 = vmatprep.subr.mxu0 0.0
      %276 = vmatpush1.msra.mxu0 0.0
      %277 = vmatprep.subr.mxu0 0.0
      %278 = vmatpush1.msra.mxu0 0.0
      %279 = vmatprep.subr.mxu0 0.0
      %280 = vmatpush1.msra.mxu0 0.0
      %281 = vmatprep.subr.mxu0 0.0
      %282 = vmatpush1.msra.mxu0 0.0
      %283 = vmatprep.subr.mxu0 0.0
      %284 = vmatpush1.msra.mxu0 0.0
      %285 = vmatprep.subr.mxu0 0.0
      %286 = vmatpush1.msra.mxu0 0.0
      %287 = vmatprep.subr.mxu0 0.0
      %288 = vmatpush1.msra.mxu0 0.0
      %289 = vmatprep.subr.mxu0 0.0
      %290 = vmatpush1.msra.mxu0 0.0
      %291 = vmatprep.subr.mxu0 0.0
      %292 = vmatpush1.msra.mxu0 0.0
      %293 = vmatprep.subr.mxu0 0.0
      %294 = vmatpush1.msra.mxu0 0.0
      %295 = vmatprep.subr.mxu0 0.0
      %296 = vmatpush1.msra.mxu0 0.0
      %297 = vmatprep.subr.mxu0 0.0
      %298 = vmatpush1.msra.mxu0 0.0
      %299 = vmatprep.subr.mxu0 0.0
      %300 = vmatpush1.msra.mxu0 0.0
      %301 = vmatprep.subr.mxu0 0.0
      %302 = vmatpush1.msra.mxu0 0.0
      %303 = vmatprep.subr.mxu0 0.0
      %304 = vmatpush1.msra.mxu0 0.0
      %305 = vmatprep.subr.mxu0 0.0
      %306 = vmatpush1.msra.mxu0 0.0
      %307 = vmatprep.subr.mxu0 0.0
      %308 = vmatpush1.msra.mxu0 0.0
      %309 = vmatprep.subr.mxu0 0.0
      %310 = vmatpush1.msra.mxu0 0.0
      %311 = vmatprep.subr.mxu0 0.0
      %312 = vmatpush1.msra.mxu0 0.0
      %313 = vmatprep.subr.mxu0 0.0
      %314 = vmatpush1.msra.mxu0 0.0
      %315 = vmatprep.subr.mxu0 0.0
      %316 = vmatpush1.msra.mxu0 0.0
      %317 = vmatprep.subr.mxu0 0.0
      %318 = vmatpush1.msra.mxu0 0.0
      %319 = vmatprep.subr.mxu0 0.0
      %320 = vmatpush1.msra.mxu0 0.0
      %321 = vmatprep.subr.mxu0 0.0
      %322 = vmatpush1.msra.mxu0 0.0
      %323 = vmatprep.subr.mxu0 0.0
      %324 = vmatpush1.msra.mxu0 0.0
      %325 = vmatprep.mubr.f32.mxu0 0.0
      %326 = vmatmul.mubr.f32.gmra.mrb[0].mxu0 %v249
      %v327 = vpop.f32.mrb[0].mxu0
      %v328 = vadd.f32 %v245, %v327
      %v329 = vpop.f32.mrb[0].mxu0
      %v330 = vadd.f32 %v245, %v329
      %331 = vdwg.mxu0
      %332 = vmatprep.subr.mxu0 0.0
      %333 = vmatpush1.msra.mxu0 %v228
      %334 = vmatprep.subr.mxu0 0.0
      %335 = vmatpush1.msra.mxu0 %v231
      %336 = vmatprep.subr.mxu0 0.0
      %337 = vmatpush1.msra.mxu0 %v234
      %338 = vmatprep.subr.mxu0 0.0
      %339 = vmatpush1.msra.mxu0 %v237
      %340 = vmatprep.subr.mxu0 0.0
      %341 = vmatpush1.msra.mxu0 %v259
      %342 = vmatprep.subr.mxu0 0.0
      %343 = vmatpush1.msra.mxu0 0.0
      %344 = vmatprep.subr.mxu0 0.0
      %345 = vmatpush1.msra.mxu0 0.0
      %346 = vmatprep.subr.mxu0 0.0
      %347 = vmatpush1.msra.mxu0 0.0
      %348 = vmatprep.subr.mxu0 0.0
      %349 = vmatpush1.msra.mxu0 0.0
      %350 = vmatprep.subr.mxu0 0.0
      %351 = vmatpush1.msra.mxu0 0.0
      %352 = vmatprep.subr.mxu0 0.0
      %353 = vmatpush1.msra.mxu0 0.0
      %354 = vmatprep.subr.mxu0 0.0
      %355 = vmatpush1.msra.mxu0 0.0
      %356 = vmatprep.subr.mxu0 0.0
      %357 = vmatpush1.msra.mxu0 0.0
      %358 = vmatprep.subr.mxu0 0.0
      %359 = vmatpush1.msra.mxu0 0.0
      %360 = vmatprep.subr.mxu0 0.0
      %361 = vmatpush1.msra.mxu0 0.0
      %362 = vmatprep.subr.mxu0 0.0
      %363 = vmatpush1.msra.mxu0 0.0
      %364 = vmatprep.subr.mxu0 0.0
      %365 = vmatpush1.msra.mxu0 0.0
      %366 = vmatprep.subr.mxu0 0.0
      %367 = vmatpush1.msra.mxu0 0.0
      %368 = vmatprep.subr.mxu0 0.0
      %369 = vmatpush1.msra.mxu0 0.0
      %370 = vmatprep.subr.mxu0 0.0
      %371 = vmatpush1.msra.mxu0 0.0
      %372 = vmatprep.subr.mxu0 0.0
      %373 = vmatpush1.msra.mxu0 0.0
      %374 = vmatprep.subr.mxu0 0.0
      %375 = vmatpush1.msra.mxu0 0.0
      %376 = vmatprep.subr.mxu0 0.0
      %377 = vmatpush1.msra.mxu0 0.0
      %378 = vmatprep.subr.mxu0 0.0
      %379 = vmatpush1.msra.mxu0 0.0
      %380 = vmatprep.subr.mxu0 0.0
      %381 = vmatpush1.msra.mxu0 0.0
      %382 = vmatprep.subr.mxu0 0.0
      %383 = vmatpush1.msra.mxu0 0.0
      %384 = vmatprep.subr.mxu0 0.0
      %385 = vmatpush1.msra.mxu0 0.0
      %386 = vmatprep.subr.mxu0 0.0
      %387 = vmatpush1.msra.mxu0 0.0
      %388 = vmatprep.subr.mxu0 0.0
      %389 = vmatpush1.msra.mxu0 0.0
      %390 = vmatprep.subr.mxu0 0.0
      %391 = vmatpush1.msra.mxu0 0.0
      %392 = vmatprep.subr.mxu0 0.0
      %393 = vmatpush1.msra.mxu0 0.0
      %394 = vmatprep.subr.mxu0 0.0
      %395 = vmatpush1.msra.mxu0 0.0
      %396 = vmatprep.mubr.f32.mxu0 0.0
      %397 = vmatmul.mubr.f32.gmra.mrb[0].mxu0 %v249
      %v398 = vpop.f32.mrb[0].mxu0
      %v399 = vadd.f32 %v245, %v398
      %v400 = vpop.f32.mrb[0].mxu0
      %401 = vdwg.mxu0
      %v402 = vadd.f32 %v328, %v330
      %vm403 = vcmask 556032
      %v404 = vsel %vm403, %v399, 0.0
      %v405 = vadd.f32 %v402, %v404
      %406 = vadd.xlane.f32.xlu0 %v405
      %v407 = vpop.xlane.xlu0 %406
      %v408 = vrot.slane %v407, 4
      %v409 = vadd.f32 %v407, %v408
      %v410 = vrot.slane %v409, 2
      %v411 = vadd.f32 %v409, %v410
      %v412 = vrot.slane %v411, 1
      %v413 = vadd.f32 %v411, %v412
      %s414 = vtos %v413
      %v415 = vrcp.pop 2592.0
      %s416 = vtos %v415
      %s417 = smul.f32 %s414, %s416
      %v418 = vstv %s417
      %v419 = vsub.f32 %v328, %v418
      %v420 = vsub.f32 %v330, %v418
      %v421 = vsub.f32 %v399, %v418
      %v422 = vmul.f32 %v419, %v419
      %v423 = vmul.f32 %v420, %v420
      %v424 = vmul.f32 %v421, %v421
      %v425 = vadd.f32 %v422, %v423
      %v426 = vsel %vm403, %v424, 0.0
      %v427 = vadd.f32 %v425, %v426
      %428 = vadd.xlane.f32.xlu0 %v427
      %v429 = vpop.xlane.xlu0 %428
      %v430 = vrot.slane %v429, 4
      %v431 = vadd.f32 %v429, %v430
      %v432 = vrot.slane %v431, 2
      %v433 = vadd.f32 %v431, %v432
      %v434 = vrot.slane %v433, 1
      %v435 = vadd.f32 %v433, %v434
      %s436 = vtos %v435
      %v437 = vrcp.pop 2592.0
      %s438 = vtos %v437
      %s439 = smul.f32 %s436, %s438
      %s440 = sadd.f32 %s439, 1e-05
      %v441 = vstv %s440
      %v442 = vrsqrt.pop %v441
      %s443 = vtos %v442
      %v444 = vstv %s443
      %v445 = vmul.f32 %v419, %v444
      %v446 = vmul.f32 %v420, %v444
      %v447 = vmul.f32 %v421, %v444
      %v448 = vld [vmem:[%s3] sm:$0xff]
      %v449 = vld [vmem:[%s3 + $0x8] sm:$0xff]
      %v450 = vld [vmem:[%s3 + $0x10] sm:$0xff]
      %v451 = vmul.f32 %v445, %v448
      %v452 = vmul.f32 %v446, %v449
      %v453 = vmul.f32 %v447, %v450
      %v454 = vld [vmem:[%s4] sm:$0xff]
      %v455 = vld [vmem:[%s4 + $0x8] sm:$0xff]
      %v456 = vld [vmem:[%s4 + $0x10] sm:$0xff]
      %v457 = vadd.f32 %v451, %v454
      %v458 = vadd.f32 %v452, %v455
      %v459 = vadd.f32 %v453, %v456
      %v460 = vmax.f32 %v457, 0.0
      %v461 = vmax.f32 %v458, 0.0
      %v462 = vmax.f32 %v459, 0.0
      %463 = vst [vmem:[%s224] sm:$0xff] %v460
      %464 = vst [vmem:[%s224 + $0x8] sm:$0xff] %v461
      %465 = vst.msk [vmem:[%s224 + $0x10] sm:$0xff] %vm403, %v462
      %p466 = scmp.lt.s32.totalorder %s16, 1
      %s467 = scalar_select %p466, %s16, 1
      %s468 = smul.addr %s467, 3
      %s469 = smul.addr %s468, 8
      %s470 = scalar_lea.vmem %s5, %s469
      // Predicated region
      $region41: #{bdec_block_forward.2} parent=39 // pred_check
        %p471 = pneg %p144
      $region42: #{bdec_block_forward.2} parent=39 // pred_check_branch
        %473 = sbr.rel (%p471) target = $region44
      $region43: #{bdec_block_forward.2} parent=39 // pred_region
        _
      $region44: #{bdec_block_forward.2} parent=39 // pred_fallthru
        _
    $region40: #{bdec_block_forward.2} parent=5 // pred_fallthru
      _
    %p474 = scmp.le.s32.totalorder 2, %s11
    // Predicated region
    $region45: #{bdec_block_forward.2} parent=5 // pred_check
      %p475 = pneg %p474
    $region46: #{bdec_block_forward.2} parent=5 // pred_check_branch
      %477 = sbr.rel (%p475) target = $region48
    $region47: #{bdec_block_forward.2} parent=5 // pred_region
      %s478 = ssub.s32 %s11, 2
      // Predicated region
      $region49: #{bdec_block_forward.2} parent=47 // pred_check
        %p479 = pneg %p150
      $region50: #{bdec_block_forward.2} parent=47 // pred_check_branch
        %481 = sbr.rel (%p479) target = $region52
      $region51: #{bdec_block_forward.2} parent=47 // pred_region
        %p482 = scmp.lt.s32.totalorder %s17, 1
        %s483 = scalar_select %p482, %s17, 1
        %s484 = smul.addr %s483, 3
        %s485 = smul.addr %s484, 8
        %s486 = scalar_lea.vmem %s5, %s485
      $region52: #{bdec_block_forward.2} parent=47 // pred_fallthru
        _
    $region48: #{bdec_block_forward.2} parent=5 // pred_fallthru
      _
  $region6: #{bdec_block_forward.2} parent=0 // loop_footer
    %s15 = sadd.s32 1, %s11
  $region7: #{bdec_block_forward.2} parent=0 // loop_footer_branch
    %10 = sbr.rel target = $region3
  $region8: #{bdec_block_forward.2} parent=0 // loop_exit
    _

// kernel: bdec_block_forward.3
$region0: #{bdec_block_forward.3}
  #allocation0 [shape = 'u32[]', space=smem, size = 0x4, offset = 0x4, fixed_abs, tag = 'smem constant byte address 0x4 - core index']
  #allocation1 [shape = 'u32[144,128]{1,0:T(1,128)}', space=vmem, size = 0x12000, scoped, tag = 'internal scratch']
  %s0 = inlined_call_operand.vmem [shape: f32[2,72,400], index: 0, kind: input, shape index: {}]
  %s1 = inlined_call_operand.vmem [shape: f32[4,72], index: 1, kind: input, shape index: {}]
  %s2 = inlined_call_operand.vmem [shape: f32[4,1], index: 2, kind: input, shape index: {}]
  %s3 = inlined_call_operand.vmem [shape: f32[4,400], index: 3, kind: input, shape index: {}]
  %s4 = inlined_call_operand.vmem [shape: f32[4,400], index: 4, kind: input, shape index: {}]
  %s5 = inlined_call_operand.vmem [shape: f32[2,4,400], index: 5, kind: output, shape index: {}]
  %s6 = sld [smem:[#allocation0]]
  $region53: #{bdec_block_forward.3} parent=0
    _
  %s8 = ssub.s32 1, %s6
  %s9 = scalar_select 0, %s8, %s6
  loop: start=0, step=1, limit=4
  $region2: #{bdec_block_forward.3} parent=0 // loop_pre_header
    _
  $region3: #{bdec_block_forward.3} parent=0 // loop_header
    %s11 = sphi 0, %s15
    %p12 = scmp.ge.s32.totalorder %s11, 4
    %s21 = sphi 0, %s23
    %s24 = sphi 0, %s21
    %s25 = sphi 0, %s24
    %s41 = sphi 0, %s25
    %s45 = sphi 0, %s45
    %s47 = sphi 0, %s45
    %s48 = sphi 0, %s47
    %s62 = sphi 0, %s48
    %s66 = sphi 0, %s66
    %s68 = sphi 0, %s66
    %s69 = sphi 0, %s68
    %s83 = sphi 0, %s69
    %s87 = sphi 0, %s87
    %s89 = sphi 0, %s87
    %s90 = sphi 0, %s89
    %s104 = sphi 0, %s90
    %s108 = sphi 0, %s108
    %s110 = sphi 0, %s108
    %s111 = sphi 0, %s110
    %s125 = sphi 0, %s111
    %s131 = sphi 0, %s133
    %s134 = sphi 0, %s131
    %s135 = sphi 0, %s134
    %s151 = sphi 0, %s135
  $region4: #{bdec_block_forward.3} parent=0 // loop_header_branch
    %14 = sbr.rel (%p12) target = $region8
  $region5: #{bdec_block_forward.3} parent=0 // loop_body
    %s16 = ssub.s32 %s11, 1
    %s17 = ssub.s32 %s11, 2
    %s18 = sadd.s32 %s11, 1
    %s19 = ssub.s32 %s11, %s18
    %p20 = scmp.eq.s32.totalorder %s19, 0
    %s22 = sadd.s32 %s21, 1
    %s23 = scalar_select %p20, %s21, %s22
    %p26 = pneg %p20
    %p27 = scmp.eq.s32.totalorder %s11, 1
    %p28 = por %p26, %p27
    %p29 = scmp.ne.s32.totalorder %s21, %s24
    %p30 = scmp.eq.s32.totalorder %s11, 0
    %p31 = por %p29, %p30
    %p32 = scmp.ne.s32.totalorder %s21, %s24
    %p33 = scmp.eq.s32.totalorder %s16, 1
    %p34 = por %p32, %p33
    %p35 = scmp.ne.s32.totalorder %s24, %s25
    %p36 = scmp.eq.s32.totalorder %s16, 0
    %p37 = por %p35, %p36
    %p38 = scmp.ne.s32.totalorder %s24, %s25
    %p39 = scmp.eq.s32.totalorder %s17, 1
    %p40 = por %p38, %p39
    %p42 = scmp.ne.s32.totalorder %s25, %s41
    %p43 = scmp.eq.s32.totalorder %s17, 0
    %p44 = por %p42, %p43
    %s46 = sadd.s32 %s45, 1
    %p49 = scmp.eq.s32.totalorder %s11, 1
    %p50 = scmp.ne.s32.totalorder %s45, %s47
    %p51 = scmp.eq.s32.totalorder %s11, 0
    %p52 = por %p50, %p51
    %p53 = scmp.ne.s32.totalorder %s45, %s47
    %p54 = scmp.eq.s32.totalorder %s16, 1
    %p55 = por %p53, %p54
    %p56 = scmp.ne.s32.totalorder %s47, %s48
    %p57 = scmp.eq.s32.totalorder %s16, 0
    %p58 = por %p56, %p57
    %p59 = scmp.ne.s32.totalorder %s47, %s48
    %p60 = scmp.eq.s32.totalorder %s17, 1
    %p61 = por %p59, %p60
    %p63 = scmp.ne.s32.totalorder %s48, %s62
    %p64 = scmp.eq.s32.totalorder %s17, 0
    %p65 = por %p63, %p64
    %s67 = sadd.s32 %s66, 1
    %p70 = scmp.eq.s32.totalorder %s11, 1
    %p71 = scmp.ne.s32.totalorder %s66, %s68
    %p72 = scmp.eq.s32.totalorder %s11, 0
    %p73 = por %p71, %p72
    %p74 = scmp.ne.s32.totalorder %s66, %s68
    %p75 = scmp.eq.s32.totalorder %s16, 1
    %p76 = por %p74, %p75
    %p77 = scmp.ne.s32.totalorder %s68, %s69
    %p78 = scmp.eq.s32.totalorder %s16, 0
    %p79 = por %p77, %p78
    %p80 = scmp.ne.s32.totalorder %s68, %s69
    %p81 = scmp.eq.s32.totalorder %s17, 1
    %p82 = por %p80, %p81
    %p84 = scmp.ne.s32.totalorder %s69, %s83
    %p85 = scmp.eq.s32.totalorder %s17, 0
    %p86 = por %p84, %p85
    %s88 = sadd.s32 %s87, 1
    %p91 = scmp.eq.s32.totalorder %s11, 1
    %p92 = scmp.ne.s32.totalorder %s87, %s89
    %p93 = scmp.eq.s32.totalorder %s11, 0
    %p94 = por %p92, %p93
    %p95 = scmp.ne.s32.totalorder %s87, %s89
    %p96 = scmp.eq.s32.totalorder %s16, 1
    %p97 = por %p95, %p96
    %p98 = scmp.ne.s32.totalorder %s89, %s90
    %p99 = scmp.eq.s32.totalorder %s16, 0
    %p100 = por %p98, %p99
    %p101 = scmp.ne.s32.totalorder %s89, %s90
    %p102 = scmp.eq.s32.totalorder %s17, 1
    %p103 = por %p101, %p102
    %p105 = scmp.ne.s32.totalorder %s90, %s104
    %p106 = scmp.eq.s32.totalorder %s17, 0
    %p107 = por %p105, %p106
    %s109 = sadd.s32 %s108, 1
    %p112 = scmp.eq.s32.totalorder %s11, 1
    %p113 = scmp.ne.s32.totalorder %s108, %s110
    %p114 = scmp.eq.s32.totalorder %s11, 0
    %p115 = por %p113, %p114
    %p116 = scmp.ne.s32.totalorder %s108, %s110
    %p117 = scmp.eq.s32.totalorder %s16, 1
    %p118 = por %p116, %p117
    %p119 = scmp.ne.s32.totalorder %s110, %s111
    %p120 = scmp.eq.s32.totalorder %s16, 0
    %p121 = por %p119, %p120
    %p122 = scmp.ne.s32.totalorder %s110, %s111
    %p123 = scmp.eq.s32.totalorder %s17, 1
    %p124 = por %p122, %p123
    %p126 = scmp.ne.s32.totalorder %s111, %s125
    %p127 = scmp.eq.s32.totalorder %s17, 0
    %p128 = por %p126, %p127
    %s129 = ssub.s32 %s11, %s18
    %p130 = scmp.eq.s32.totalorder %s129, 0
    %s132 = sadd.s32 %s131, 1
    %s133 = scalar_select %p130, %s131, %s132
    %p136 = pneg %p130
    %p137 = scmp.eq.s32.totalorder %s11, 1
    %p138 = por %p136, %p137
    %p139 = scmp.ne.s32.totalorder %s131, %s134
    %p140 = scmp.eq.s32.totalorder %s11, 0
    %p141 = por %p139, %p140
    %p142 = scmp.ne.s32.totalorder %s131, %s134
    %p143 = scmp.eq.s32.totalorder %s16, 1
    %p144 = por %p142, %p143
    %p145 = scmp.ne.s32.totalorder %s134, %s135
    %p146 = scmp.eq.s32.totalorder %s16, 0
    %p147 = por %p145, %p146
    %p148 = scmp.ne.s32.totalorder %s134, %s135
    %p149 = scmp.eq.s32.totalorder %s17, 1
    %p150 = por %p148, %p149
    %p152 = scmp.ne.s32.totalorder %s135, %s151
    %p153 = scmp.eq.s32.totalorder %s17, 0
    %p154 = por %p152, %p153
    %p155 = scmp.le.s32.totalorder 1, %s11
    %p156 = scmp.lt.s32.totalorder %s11, 3
    %p157 = pnand %p155, %p156
    %p158 = pneg %p157
    // Predicated region
    $region9: #{bdec_block_forward.3} parent=5 // pred_check
      _
    $region10: #{bdec_block_forward.3} parent=5 // pred_check_branch
      %160 = sbr.rel (%p157) target = $region12
    $region11: #{bdec_block_forward.3} parent=5 // pred_region
      %s161 = ssub.s32 %s11, 1
      // Predicated region
      $region13: #{bdec_block_forward.3} parent=11 // pred_check
        %p162 = pneg %p58
      $region14: #{bdec_block_forward.3} parent=11 // pred_check_branch
        %164 = sbr.rel (%p162) target = $region16
      $region15: #{bdec_block_forward.3} parent=11 // pred_region
        _
      $region16: #{bdec_block_forward.3} parent=11 // pred_fallthru
        _
      // Predicated region
      $region17: #{bdec_block_forward.3} parent=11 // pred_check
        %p165 = pneg %p79
      $region18: #{bdec_block_forward.3} parent=11 // pred_check_branch
        %167 = sbr.rel (%p165) target = $region20
      $region19: #{bdec_block_forward.3} parent=11 // pred_region
        _
      $region20: #{bdec_block_forward.3} parent=11 // pred_fallthru
        _
      // Predicated region
      $region21: #{bdec_block_forward.3} parent=11 // pred_check
        %p168 = pneg %p100
      $region22: #{bdec_block_forward.3} parent=11 // pred_check_branch
        %170 = sbr.rel (%p168) target = $region24
      $region23: #{bdec_block_forward.3} parent=11 // pred_region
        _
      $region24: #{bdec_block_forward.3} parent=11 // pred_fallthru
        _
      // Predicated region
      $region25: #{bdec_block_forward.3} parent=11 // pred_check
        %p171 = pneg %p121
      $region26: #{bdec_block_forward.3} parent=11 // pred_check_branch
        %173 = sbr.rel (%p171) target = $region28
      $region27: #{bdec_block_forward.3} parent=11 // pred_region
        _
      $region28: #{bdec_block_forward.3} parent=11 // pred_fallthru
        _
    $region12: #{bdec_block_forward.3} parent=5 // pred_fallthru
      _
    %p174 = scmp.lt.s32.totalorder %s11, 2
    // Predicated region
    $region29: #{bdec_block_forward.3} parent=5 // pred_check
      %p175 = pneg %p174
    $region30: #{bdec_block_forward.3} parent=5 // pred_check_branch
      %177 = sbr.rel (%p175) target = $region32
    $region31: #{bdec_block_forward.3} parent=5 // pred_region
      // Predicated region
      $region33: #{bdec_block_forward.3} parent=31 // pred_check
        %p178 = pneg %p31
      $region34: #{bdec_block_forward.3} parent=31 // pred_check_branch
        %180 = sbr.rel (%p178) target = $region36
      $region35: #{bdec_block_forward.3} parent=31 // pred_region
        %p181 = scmp.lt.s32.totalorder %s11, 1
        %s182 = scalar_select %p181, %s11, 1
        %s183 = smul.addr %s182, 36
        %s184 = smul.addr %s183, 8
        %s185 = scalar_lea.vmem %s0, %s184
      $region36: #{bdec_block_forward.3} parent=31 // pred_fallthru
        _
    $region32: #{bdec_block_forward.3} parent=5 // pred_fallthru
      _
    %p186 = scmp.le.s32.totalorder 1, %s11
    %p187 = scmp.lt.s32.totalorder %s11, 3
    %p188 = pnand %p186, %p187
    %p189 = pneg %p188
    // Predicated region
    $region37: #{bdec_block_forward.3} parent=5 // pred_check
      _
    $region38: #{bdec_block_forward.3} parent=5 // pred_check_branch
      %191 = sbr.rel (%p188) target = $region40
    $region39: #{bdec_block_forward.3} parent=5 // pred_region
      %s192 = ssub.s32 %s11, 1
      %p193 = scmp.lt.s32.totalorder %s16, 1
      %s194 = scalar_select %p193, %s16, 1
      %s195 = smul.addr %s194, 36
      %s196 = smul.addr %s195, 8
      %s197 = scalar_lea.vmem %s0, %s196
      %p198 = pneg %p37
      %p199 = pneg %p34
      %p200 = pneg %p58
      %p201 = pneg %p55
      %p202 = pneg %p79
      %p203 = pneg %p76
      %p204 = pneg %p100
      %p205 = pneg %p97
      %p206 = pneg %p121
      %p207 = pneg %p118
      %p208 = pneg %p147
      %p209 = pneg %p144
      %p210 = scmp.lt.s32.totalorder %s16, 1
      %s211 = scalar_select %p210, %s16, 1
      %s212 = smul.addr %s211, 4
      %s213 = smul.addr %s212, 4
      %s214 = scalar_lea.vmem %s5, %s213
      %p215 = scmp.lt.s32.totalorder %s16, 1
      %s216 = scalar_select %p215, %s16, 1
      %s217 = smul.addr %s216, 36
      %s218 = smul.addr %s217, 8
      %s219 = scalar_lea.vmem %s0, %s218
      %p220 = scmp.lt.s32.totalorder %s16, 1
      %s221 = scalar_select %p220, %s16, 1
      %s222 = smul.addr %s221, 4
      %s223 = smul.addr %s222, 4
      %s224 = scalar_lea.vmem %s5, %s223
      %v225 = vld [vmem:[%s1] sm:$0xf]
      %v226 = vld [vmem:[%s219] sm:$0xff]
      %v227 = vld [vmem:[%s219 + $0x8] sm:$0xff]
      %v228 = vld [vmem:[%s219 + $0x10] sm:$0xff]
      %v229 = vld [vmem:[%s219 + $0x18] sm:$0xff]
      %v230 = vld [vmem:[%s219 + $0x20] sm:$0xff]
      %v231 = vld [vmem:[%s219 + $0x28] sm:$0xff]
      %v232 = vld [vmem:[%s219 + $0x30] sm:$0xff]
      %v233 = vld [vmem:[%s219 + $0x38] sm:$0xff]
      %v234 = vld [vmem:[%s219 + $0x40] sm:$0xff]
      %v235 = vld [vmem:[%s219 + $0x48] sm:$0xff]
      %v236 = vld [vmem:[%s219 + $0x50] sm:$0xff]
      %v237 = vld [vmem:[%s219 + $0x58] sm:$0xff]
      %v238 = vld [vmem:[%s219 + $0x60] sm:$0xff]
      %v239 = vld [vmem:[%s219 + $0x68] sm:$0xff]
      %v240 = vld [vmem:[%s219 + $0x70] sm:$0xff]
      %v241 = vld [vmem:[%s219 + $0x78] sm:$0xff]
      %v242 = vld [vmem:[%s219 + $0x80] sm:$0xff]
      %v243 = vld [vmem:[%s219 + $0x88] sm:$0xff]
      %v244 = vld [vmem:[%s219 + $0x90] sm:$0xff]
      %v245 = vld [vmem:[%s219 + $0x98] sm:$0xff]
      %v246 = vld [vmem:[%s219 + $0xa0] sm:$0xff]
      %v247 = vld [vmem:[%s219 + $0xa8] sm:$0xff]
      %v248 = vld [vmem:[%s219 + $0xb0] sm:$0xff]
      %v249 = vld [vmem:[%s219 + $0xb8] sm:$0xff]
      %v250 = vld [vmem:[%s219 + $0xc0] sm:$0xff]
      %v251 = vld [vmem:[%s219 + $0xc8] sm:$0xff]
      %v252 = vld [vmem:[%s219 + $0xd0] sm:$0xff]
      %v253 = vld [vmem:[%s219 + $0xd8] sm:$0xff]
      %v254 = vld [vmem:[%s219 + $0xe0] sm:$0xff]
      %v255 = vld [vmem:[%s219 + $0xe8] sm:$0xff]
      %v256 = vld [vmem:[%s219 + $0xf0] sm:$0xff]
      %v257 = vld [vmem:[%s219 + $0xf8] sm:$0xff]
      %v258 = vld [vmem:[%s219 + $0x100] sm:$0xff]
      %v259 = vld [vmem:[%s219 + $0x108] sm:$0xff]
      %v260 = vld [vmem:[%s219 + $0x110] sm:$0xff]
      %v261 = vld [vmem:[%s219 + $0x118] sm:$0xff]
      %v262 = vld [vmem:[%s2] sm:$0xf]
      %264 = vset.pattern.permute.xlu0 0
      %265 = vperm.xlu0 %264, %v262
      %v266 = vpop.permute.xlu0 %265
      %vm268 = vcmask 588800
      %v270 = vsel %vm268, %v225, 0
      %272 = vmatprep.subr.mxu0 %v227
      %273 = vmatpush1.msra.mxu0 %v226
      %274 = vmatprep.subr.mxu0 %v231
      %275 = vmatpush1.msra.mxu0 %v230
      %276 = vmatprep.subr.mxu0 %v235
      %277 = vmatpush1.msra.mxu0 %v234
      %278 = vmatprep.subr.mxu0 %v239
      %279 = vmatpush1.msra.mxu0 %v238
      %280 = vmatprep.subr.mxu0 %v243
      %281 = vmatpush1.msra.mxu0 %v242
      %282 = vmatprep.subr.mxu0 %v247
      %283 = vmatpush1.msra.mxu0 %v246
      %284 = vmatprep.subr.mxu0 %v251
      %285 = vmatpush1.msra.mxu0 %v250
      %286 = vmatprep.subr.mxu0 %v255
      %287 = vmatpush1.msra.mxu0 %v254
      %288 = vmatprep.subr.mxu0 %v259
      %289 = vmatpush1.msra.mxu0 %v258
      %290 = vmatprep.subr.mxu0 0.0
      %291 = vmatpush1.msra.mxu0 0.0
      %292 = vmatprep.subr.mxu0 0.0
      %293 = vmatpush1.msra.mxu0 0.0
      %294 = vmatprep.subr.mxu0 0.0
      %295 = vmatpush1.msra.mxu0 0.0
      %296 = vmatprep.subr.mxu0 0.0
      %297 = vmatpush1.msra.mxu0 0.0
      %298 = vmatprep.subr.mxu0 0.0
      %299 = vmatpush1.msra.mxu0 0.0
      %300 = vmatprep.subr.mxu0 0.0
      %301 = vmatpush1.msra.mxu0 0.0
      %302 = vmatprep.subr.mxu0 0.0
      %303 = vmatpush1.msra.mxu0 0.0
      %304 = vmatprep.subr.mxu0 0.0
      %305 = vmatpush1.msra.mxu0 0.0
      %306 = vmatprep.subr.mxu0 0.0
      %307 = vmatpush1.msra.mxu0 0.0
      %308 = vmatprep.subr.mxu0 0.0
      %309 = vmatpush1.msra.mxu0 0.0
      %310 = vmatprep.subr.mxu0 0.0
      %311 = vmatpush1.msra.mxu0 0.0
      %312 = vmatprep.subr.mxu0 0.0
      %313 = vmatpush1.msra.mxu0 0.0
      %314 = vmatprep.subr.mxu0 0.0
      %315 = vmatpush1.msra.mxu0 0.0
      %316 = vmatprep.subr.mxu0 0.0
      %317 = vmatpush1.msra.mxu0 0.0
      %318 = vmatprep.subr.mxu0 0.0
      %319 = vmatpush1.msra.mxu0 0.0
      %320 = vmatprep.subr.mxu0 0.0
      %321 = vmatpush1.msra.mxu0 0.0
      %322 = vmatprep.subr.mxu0 0.0
      %323 = vmatpush1.msra.mxu0 0.0
      %324 = vmatprep.subr.mxu0 0.0
      %325 = vmatpush1.msra.mxu0 0.0
      %326 = vmatprep.subr.mxu0 0.0
      %327 = vmatpush1.msra.mxu0 0.0
      %328 = vmatprep.subr.mxu0 0.0
      %329 = vmatpush1.msra.mxu0 0.0
      %330 = vmatprep.subr.mxu0 0.0
      %331 = vmatpush1.msra.mxu0 0.0
      %332 = vmatprep.subr.mxu0 0.0
      %333 = vmatpush1.msra.mxu0 0.0
      %334 = vmatprep.subr.mxu0 0.0
      %335 = vmatpush1.msra.mxu0 0.0
      %336 = vmatprep.mubr.f32.mxu0 0.0
      %337 = vmatmul.mubr.f32.gmra.mrb[0].mxu0 %v270
      %v338 = vpop.f32.mrb[0].mxu0
      %v339 = vadd.f32 %v266, %v338
      %v340 = vpop.f32.mrb[0].mxu0
      %v341 = vadd.f32 %v266, %v340
      %342 = vdwg.mxu0
      %343 = vmatprep.subr.mxu0 %v229
      %344 = vmatpush1.msra.mxu0 %v228
      %345 = vmatprep.subr.mxu0 %v233
      %346 = vmatpush1.msra.mxu0 %v232
      %347 = vmatprep.subr.mxu0 %v237
      %348 = vmatpush1.msra.mxu0 %v236
      %349 = vmatprep.subr.mxu0 %v241
      %350 = vmatpush1.msra.mxu0 %v240
      %351 = vmatprep.subr.mxu0 %v245
      %352 = vmatpush1.msra.mxu0 %v244
      %353 = vmatprep.subr.mxu0 %v249
      %354 = vmatpush1.msra.mxu0 %v248
      %355 = vmatprep.subr.mxu0 %v253
      %356 = vmatpush1.msra.mxu0 %v252
      %357 = vmatprep.subr.mxu0 %v257
      %358 = vmatpush1.msra.mxu0 %v256
      %359 = vmatprep.subr.mxu0 %v261
      %360 = vmatpush1.msra.mxu0 %v260
      %361 = vmatprep.subr.mxu0 0.0
      %362 = vmatpush1.msra.mxu0 0.0
      %363 = vmatprep.subr.mxu0 0.0
      %364 = vmatpush1.msra.mxu0 0.0
      %365 = vmatprep.subr.mxu0 0.0
      %366 = vmatpush1.msra.mxu0 0.0
      %367 = vmatprep.subr.mxu0 0.0
      %368 = vmatpush1.msra.mxu0 0.0
      %369 = vmatprep.subr.mxu0 0.0
      %370 = vmatpush1.msra.mxu0 0.0
      %371 = vmatprep.subr.mxu0 0.0
      %372 = vmatpush1.msra.mxu0 0.0
      %373 = vmatprep.subr.mxu0 0.0
      %374 = vmatpush1.msra.mxu0 0.0
      %375 = vmatprep.subr.mxu0 0.0
      %376 = vmatpush1.msra.mxu0 0.0
      %377 = vmatprep.subr.mxu0 0.0
      %378 = vmatpush1.msra.mxu0 0.0
      %379 = vmatprep.subr.mxu0 0.0
      %380 = vmatpush1.msra.mxu0 0.0
      %381 = vmatprep.subr.mxu0 0.0
      %382 = vmatpush1.msra.mxu0 0.0
      %383 = vmatprep.subr.mxu0 0.0
      %384 = vmatpush1.msra.mxu0 0.0
      %385 = vmatprep.subr.mxu0 0.0
      %386 = vmatpush1.msra.mxu0 0.0
      %387 = vmatprep.subr.mxu0 0.0
      %388 = vmatpush1.msra.mxu0 0.0
      %389 = vmatprep.subr.mxu0 0.0
      %390 = vmatpush1.msra.mxu0 0.0
      %391 = vmatprep.subr.mxu0 0.0
      %392 = vmatpush1.msra.mxu0 0.0
      %393 = vmatprep.subr.mxu0 0.0
      %394 = vmatpush1.msra.mxu0 0.0
      %395 = vmatprep.subr.mxu0 0.0
      %396 = vmatpush1.msra.mxu0 0.0
      %397 = vmatprep.subr.mxu0 0.0
      %398 = vmatpush1.msra.mxu0 0.0
      %399 = vmatprep.subr.mxu0 0.0
      %400 = vmatpush1.msra.mxu0 0.0
      %401 = vmatprep.subr.mxu0 0.0
      %402 = vmatpush1.msra.mxu0 0.0
      %403 = vmatprep.subr.mxu0 0.0
      %404 = vmatpush1.msra.mxu0 0.0
      %405 = vmatprep.subr.mxu0 0.0
      %406 = vmatpush1.msra.mxu0 0.0
      %407 = vmatprep.mubr.f32.mxu0 0.0
      %408 = vmatmul.mubr.f32.gmra.mrb[0].mxu0 %v270
      %v409 = vpop.f32.mrb[0].mxu0
      %v410 = vadd.f32 %v266, %v409
      %v411 = vpop.f32.mrb[0].mxu0
      %v412 = vadd.f32 %v266, %v411
      %413 = vdwg.mxu0
      %vm414 = vcmask 1043456
      %v415 = vsel %vm414, %v339, 0.0
      %v416 = vsel %vm414, %v341, 0.0
      %v417 = vadd.f32 %v415, %v416
      %v418 = vsel %vm414, %v410, 0.0
      %v419 = vadd.f32 %v417, %v418
      %vm420 = vcmask 125952
      %v421 = vsel %vm420, %v412, 0.0
      %v422 = vadd.f32 %v419, %v421
      %423 = vadd.xlane.f32.xlu0 %v422
      %v424 = vpop.xlane.xlu0 %423
      %v425 = vrot.slane %v424, 4
      %v426 = vadd.f32 %v424, %v425
      %v427 = vrot.slane %v426, 2
      %v428 = vadd.f32 %v426, %v427
      %v429 = vrot.slane %v428, 1
      %v430 = vadd.f32 %v428, %v429
      %s431 = vtos %v430
      %v432 = vrcp.pop 1600.0
      %s433 = vtos %v432
      %s434 = smul.f32 %s431, %s433
      %v435 = vstv %s434
      %v436 = vsub.f32 %v339, %v435
      %v437 = vsub.f32 %v341, %v435
      %v438 = vsub.f32 %v410, %v435
      %v439 = vsub.f32 %v412, %v435
      %v440 = vmul.f32 %v436, %v436
      %v441 = vmul.f32 %v437, %v437
      %v442 = vmul.f32 %v438, %v438
      %v443 = vmul.f32 %v439, %v439
      %v444 = vsel %vm414, %v440, 0.0
      %v445 = vsel %vm414, %v441, 0.0
      %v446 = vadd.f32 %v444, %v445
      %v447 = vsel %vm414, %v442, 0.0
      %v448 = vadd.f32 %v446, %v447
      %v449 = vsel %vm420, %v443, 0.0
      %v450 = vadd.f32 %v448, %v449
      %451 = vadd.xlane.f32.xlu0 %v450
      %v452 = vpop.xlane.xlu0 %451
      %v453 = vrot.slane %v452, 4
      %v454 = vadd.f32 %v452, %v453
      %v455 = vrot.slane %v454, 2
      %v456 = vadd.f32 %v454, %v455
      %v457 = vrot.slane %v456, 1
      %v458 = vadd.f32 %v456, %v457
      %s459 = vtos %v458
      %v460 = vrcp.pop 1600.0
      %s461 = vtos %v460
      %s462 = smul.f32 %s459, %s461
      %s463 = sadd.f32 %s462, 1e-05
      %v464 = vstv %s463
      %v465 = vrsqrt.pop %v464
      %s466 = vtos %v465
      %v467 = vstv %s466
      %v468 = vmul.f32 %v436, %v467
      %v469 = vmul.f32 %v437, %v467
      %v470 = vmul.f32 %v438, %v467
      %v471 = vmul.f32 %v439, %v467
      %v472 = vld [vmem:[%s3] sm:$0xff]
      %v473 = vld [vmem:[%s3 + $0x8] sm:$0xff]
      %v476 = vcombine.high %v472, %v472
      %v477 = vcombine.high %v473, %v473
      %v480 = vmul.f32 %v468, %v472
      %v481 = vmul.f32 %v469, %v476
      %v482 = vmul.f32 %v470, %v473
      %v483 = vmul.f32 %v471, %v477
      %v484 = vld [vmem:[%s4] sm:$0xff]
      %v485 = vld [vmem:[%s4 + $0x8] sm:$0xff]
      %v488 = vcombine.high %v484, %v484
      %v489 = vcombine.high %v485, %v485
      %v492 = vadd.f32 %v480, %v484
      %v493 = vadd.f32 %v481, %v488
      %v494 = vadd.f32 %v482, %v485
      %v495 = vadd.f32 %v483, %v489
      %v496 = vmax.f32 %v492, 0.0
      %v497 = vmax.f32 %v493, 0.0
      %v498 = vmax.f32 %v494, 0.0
      %v499 = vmax.f32 %v495, 0.0
      %v504 = vcombine.low %v496, %v497
      %v505 = vcombine.low %v498, %v499
      %508 = vst [vmem:[%s224] sm:$0xff] %v504
      %vm509 = vcmask 130052
      %vm510 = vmor %vm509, %vm414
      %511 = vst.msk [vmem:[%s224 + $0x8] sm:$0xff] %vm510, %v505
      %p512 = scmp.lt.s32.totalorder %s16, 1
      %s513 = scalar_select %p512, %s16, 1
      %s514 = smul.addr %s513, 4
      %s515 = smul.addr %s514, 4
      %s516 = scalar_lea.vmem %s5, %s515
      // Predicated region
      $region41: #{bdec_block_forward.3} parent=39 // pred_check
        %p517 = pneg %p144
      $region42: #{bdec_block_forward.3} parent=39 // pred_check_branch
        %519 = sbr.rel (%p517) target = $region44
      $region43: #{bdec_block_forward.3} parent=39 // pred_region
        _
      $region44: #{bdec_block_forward.3} parent=39 // pred_fallthru
        _
    $region40: #{bdec_block_forward.3} parent=5 // pred_fallthru
      _
    %p520 = scmp.le.s32.totalorder 2, %s11
    // Predicated region
    $region45: #{bdec_block_forward.3} parent=5 // pred_check
      %p521 = pneg %p520
    $region46: #{bdec_block_forward.3} parent=5 // pred_check_branch
      %523 = sbr.rel (%p521) target = $region48
    $region47: #{bdec_block_forward.3} parent=5 // pred_region
      %s524 = ssub.s32 %s11, 2
      // Predicated region
      $region49: #{bdec_block_forward.3} parent=47 // pred_check
        %p525 = pneg %p150
      $region50: #{bdec_block_forward.3} parent=47 // pred_check_branch
        %527 = sbr.rel (%p525) target = $region52
      $region51: #{bdec_block_forward.3} parent=47 // pred_region
        %p528 = scmp.lt.s32.totalorder %s17, 1
        %s529 = scalar_select %p528, %s17, 1
        %s530 = smul.addr %s529, 4
        %s531 = smul.addr %s530, 4
        %s532 = scalar_lea.vmem %s5, %s531
      $region52: #{bdec_block_forward.3} parent=47 // pred_fallthru
        _
    $region48: #{bdec_block_forward.3} parent=5 // pred_fallthru
      _
  $region6: #{bdec_block_forward.3} parent=0 // loop_footer
    %s15 = sadd.s32 1, %s11
  $region7: #{bdec_block_forward.3} parent=0 // loop_footer_branch
    %10 = sbr.rel target = $region3
  $region8: #{bdec_block_forward.3} parent=0 // loop_exit
    _

</llo_original>
